<compile_context>
chip_gen: v5e
topology: v5e:2x2
jax: 0.10.0
libtpu: 0.0.40
codegen_flags: <defaults>
</compile_context>

<pallas_src>
import functools
import math

import jax
import jax.numpy as jnp
from jax import lax
from jax.experimental import pallas as pl
from jax.experimental.pallas import tpu as pltpu


def _scl_kernel(x_ref, c_ref, lab_ref, out_ref,
                fc_ref, df_ref, dr_ref,
                *, margin, batch_size, tile_rows):
    pid = pl.program_id(0)

    # ---- init running sums on the first batch tile --------------------------
    @pl.when(pid == 0)
    def _():
        fc_ref[...] = jnp.zeros_like(fc_ref)
        df_ref[...] = jnp.zeros_like(df_ref)
        dr_ref[...] = jnp.zeros_like(dr_ref)

    # ---- per-tile work -------------------------------------------------------
    x = x_ref[...].astype(jnp.float32)          # (TB, D)
    c = c_ref[...].astype(jnp.float32)          # (1, D), broadcast over rows
    lab = lab_ref[...].astype(jnp.float32)      # (TB, 1) in {0, 1}

    # per-sample Euclidean distance to the single center:
    # sqrt( sum_d (x - C)^2 ) == sqrt( MSELoss(reduction='none').sum(dim=1) )
    diff = x - c
    eud = jnp.sqrt(jnp.sum(diff * diff, axis=1, keepdims=True))   # (TB, 1)

    # Mask rows past the true batch size (partial last tile). Use jnp.where so
    # garbage / NaN values in padded rows cannot contaminate the sums.
    row = pid * tile_rows + lax.broadcasted_iota(jnp.int32, (tile_rows, 1), 0)
    valid = row < batch_size                                      # (TB, 1) bool

    lab_v = jnp.where(valid, lab, 0.0)
    eud_v = jnp.where(valid, eud, 0.0)

    # elementwise clamp BEFORE the sum, exactly like the PyTorch module
    # (valid zero-masked entries each contribute 1e-12).
    fake_term = jnp.where(valid, jnp.clip(eud_v * lab_v, 1e-12, 1.0e12), 0.0)
    real_term = jnp.where(valid, jnp.clip(eud_v * (1.0 - lab_v), 1e-12, 1.0e12), 0.0)

    fc_ref[...] += jnp.sum(lab_v)
    df_ref[...] += jnp.sum(fake_term)
    dr_ref[...] += jnp.sum(real_term)

    # ---- finalize on the last batch tile -------------------------------------
    @pl.when(pid == pl.num_programs(0) - 1)
    def _():
        fake_count = fc_ref[...]                 # (1, 1)
        dist_fake = df_ref[...]
        dist_real = dr_ref[...]
        bsz = jnp.float32(batch_size)
        dist_fake = jnp.where(fake_count != 0.0,
                              dist_fake / jnp.maximum(fake_count, 1.0),
                              dist_fake)
        dist_real = jnp.where(fake_count != bsz,
                              dist_real / jnp.maximum(bsz - fake_count, 1.0),
                              dist_real)
        max_margin = jnp.maximum(dist_real - dist_fake + jnp.float32(margin), 0.0)
        out_ref[...] = dist_real + max_margin


def _pick_tile_rows(batch, feat_dim, itemsize):
    """~2 MiB x-blocks (v5e-safe incl. double-buffering); rows a multiple of 8."""
    rows = (2 * 1024 * 1024) // max(feat_dim * itemsize, 1)
    rows = max(8, min(1024, (rows // 8) * 8))
    if batch <= rows:
        return batch            # one block covering the whole (small) batch
    return rows


def single_center_loss(x, C, labels, m=0.3, tile_rows=None):
    """x: (B, D) float, C: (D,) float, labels: (B,) int {0,1}. Returns scalar."""
    B, D = x.shape
    margin = float(m) * math.sqrt(float(D))

    if tile_rows is None:
        tile_rows = _pick_tile_rows(B, D, jnp.dtype(x.dtype).itemsize)
    tile_rows = int(tile_rows)
    grid = (pl.cdiv(B, tile_rows),)

    c2 = C.reshape(1, D)                              # keep native dtype
    lab = labels.astype(jnp.float32).reshape(B, 1)    # tiny; cheap cast

    kernel = functools.partial(_scl_kernel, margin=margin,
                               batch_size=B, tile_rows=tile_rows)

    out = pl.pallas_call(
        kernel,
        out_shape=jax.ShapeDtypeStruct((1, 1), jnp.float32),
        grid_spec=pltpu.PrefetchScalarGridSpec(
            num_scalar_prefetch=0,
            grid=grid,
            in_specs=[
                pl.BlockSpec((tile_rows, D), lambda i: (i, 0)),   # x tile
                pl.BlockSpec((1, D), lambda i: (0, 0)),           # center C
                pl.BlockSpec((tile_rows, 1), lambda i: (i, 0)),   # labels tile
            ],
            out_specs=pl.BlockSpec((1, 1), lambda i: (0, 0)),
            scratch_shapes=[pltpu.VMEM((1, 1), jnp.float32),      # fake_count
                            pltpu.VMEM((1, 1), jnp.float32),      # dist_fake
                            pltpu.VMEM((1, 1), jnp.float32)],     # dist_real
        ),
        compiler_params=pltpu.CompilerParams(
            dimension_semantics=("arbitrary",),   # accumulator across batch tiles
        ),
    )(x, c2, lab)
    return out[0, 0]


def _reference_loss(x, C, labels, m=0.3):
    """Plain-JAX reference mirroring the PyTorch module exactly."""
    B, D = x.shape
    margin = jnp.float32(m) * jnp.sqrt(jnp.float32(D))
    lab = labels.astype(jnp.float32)[:, None]
    xf = x.astype(jnp.float32)
    cf = C.astype(jnp.float32)
    eud = jnp.sqrt(jnp.sum((xf - cf[None, :]) ** 2, axis=1, keepdims=True))
    fake_count = jnp.sum(lab)
    dist_fake = jnp.sum(jnp.clip(eud * lab, 1e-12, 1.0e12))
    dist_real = jnp.sum(jnp.clip(eud * (1.0 - lab), 1e-12, 1.0e12))
    dist_fake = jnp.where(fake_count != 0, dist_fake / fake_count, dist_fake)
    dist_real = jnp.where(fake_count != B,
                          dist_real / (B - fake_count), dist_real)
    max_margin = jnp.maximum(dist_real - dist_fake + margin, 0.0)
    return dist_real + max_margin


if __name__ == "__main__":
    key = jax.random.PRNGKey(0)
    kc, kx, kl = jax.random.split(key, 3)

    m = 0.3
    D = 256

    # deterministic synthetic "learnable center" (stands in for torch.randn(D))
    C = jax.random.normal(kc, (D,), dtype=jnp.float32)

    # Test 1: small, tile-friendly shapes (single block, grid of 1).
    B = 8
    x = jax.random.normal(kx, (B, D), dtype=jnp.float32)
    labels = jax.random.bernoulli(kl, 0.5, (B,)).astype(jnp.int32)

    loss = single_center_loss(x, C, labels, m=m)
    jax.block_until_ready(loss)
    ref = _reference_loss(x, C, labels, m=m)
    assert jnp.allclose(loss, ref, rtol=1e-5, atol=1e-5), (loss, ref)

    # Test 2: force multi-tile accumulation plus a masked partial last tile
    # (B=20 with 8-row tiles -> grid of 3, last tile has 4 padded rows).
    B2 = 20
    x2 = jax.random.normal(kx, (B2, D), dtype=jnp.float32)
    labels2 = jax.random.bernoulli(kl, 0.5, (B2,)).astype(jnp.int32)
    loss2 = single_center_loss(x2, C, labels2, m=m, tile_rows=8)
    jax.block_until_ready(loss2)
    ref2 = _reference_loss(x2, C, labels2, m=m)
    assert jnp.allclose(loss2, ref2, rtol=1e-5, atol=1e-5), (loss2, ref2)

    print("KERNEL_OK")
</pallas_src>

<mosaic_0001>
module attributes {stable_mosaic.version = 11 : i64} {
  func.func @_scl_kernel(%arg0: i32, %arg1: memref<8x256xf32, #tpu.memory_space<vmem>>, %arg2: memref<1x256xf32, #tpu.memory_space<vmem>>, %arg3: memref<8x1xf32, #tpu.memory_space<vmem>>, %arg4: memref<1x1xf32, #tpu.memory_space<vmem>>, %arg5: memref<1x1xf32, #tpu.memory_space<vmem>>, %arg6: memref<1x1xf32, #tpu.memory_space<vmem>>, %arg7: memref<1x1xf32, #tpu.memory_space<vmem>>) attributes {dimension_semantics = [#tpu.dimension_semantics<arbitrary>], iteration_bounds = array<i64: 1>, scalar_prefetch = 0 : i64, scratch_operands = 3 : i64, tpu.core_type = #tpu.core_type<tc>, window_params = [{transform_indices = @transform_0, window_bounds = array<i64: 8, 256>}, {pipeline_mode = #tpu.pipeline_mode<synchronous>, transform_indices = @transform_1, window_bounds = array<i64: 1, 256>}, {transform_indices = @transform_2, window_bounds = array<i64: 8, 1>}, {pipeline_mode = #tpu.pipeline_mode<synchronous>, transform_indices = @transform_3, window_bounds = array<i64: 1, 1>}]} {
    %c0_i32 = arith.constant 0 : i32
    %0 = arith.cmpi eq, %arg0, %c0_i32 : i32
    %1 = arith.extui %0 : i1 to i32
    %c0_i32_0 = arith.constant 0 : i32
    %2 = arith.cmpi ne, %1, %c0_i32_0 : i32
    scf.if %2 {
      %cst_33 = arith.constant 0.000000e+00 : f32
      %65 = vector.broadcast %cst_33 : f32 to vector<1x1xf32>
      %c0_34 = arith.constant 0 : index
      %c0_35 = arith.constant 0 : index
      %66 = vector.load %arg5[%c0_34, %c0_35] : memref<1x1xf32, #tpu.memory_space<vmem>>, vector<1x1xf32>
      tpu.vector_store %arg5[%c0_34, %c0_35], %65 {strides = array<i32>} : memref<1x1xf32, #tpu.memory_space<vmem>>, vector<1x1xf32>,
      %cst_36 = arith.constant 0.000000e+00 : f32
      %67 = vector.broadcast %cst_36 : f32 to vector<1x1xf32>
      %c0_37 = arith.constant 0 : index
      %c0_38 = arith.constant 0 : index
      %68 = vector.load %arg6[%c0_37, %c0_38] : memref<1x1xf32, #tpu.memory_space<vmem>>, vector<1x1xf32>
      tpu.vector_store %arg6[%c0_37, %c0_38], %67 {strides = array<i32>} : memref<1x1xf32, #tpu.memory_space<vmem>>, vector<1x1xf32>,
      %cst_39 = arith.constant 0.000000e+00 : f32
      %69 = vector.broadcast %cst_39 : f32 to vector<1x1xf32>
      %c0_40 = arith.constant 0 : index
      %c0_41 = arith.constant 0 : index
      %70 = vector.load %arg7[%c0_40, %c0_41] : memref<1x1xf32, #tpu.memory_space<vmem>>, vector<1x1xf32>
      tpu.vector_store %arg7[%c0_40, %c0_41], %69 {strides = array<i32>} : memref<1x1xf32, #tpu.memory_space<vmem>>, vector<1x1xf32>,
    } else {
    }
    %c0 = arith.constant 0 : index
    %c0_1 = arith.constant 0 : index
    %3 = vector.load %arg1[%c0, %c0_1] : memref<8x256xf32, #tpu.memory_space<vmem>>, vector<8x256xf32>
    %c0_2 = arith.constant 0 : index
    %c0_3 = arith.constant 0 : index
    %4 = vector.load %arg2[%c0_2, %c0_3] : memref<1x256xf32, #tpu.memory_space<vmem>>, vector<1x256xf32>
    %c0_4 = arith.constant 0 : index
    %c0_5 = arith.constant 0 : index
    %5 = vector.load %arg3[%c0_4, %c0_5] : memref<8x1xf32, #tpu.memory_space<vmem>>, vector<8x1xf32>
    %6 = vector.broadcast %4 : vector<1x256xf32> to vector<8x256xf32>
    %7 = arith.subf %3, %6 : vector<8x256xf32>
    %8 = arith.mulf %7, %7 : vector<8x256xf32>
    %cst = arith.constant dense<0.000000e+00> : vector<8xf32>
    %9 = vector.multi_reduction <add>, %8, %cst [1] : vector<8x256xf32> to vector<8xf32>
    %10 = vector.shape_cast %9 : vector<8xf32> to vector<8x1xf32>
    %11 = math.sqrt %10 : vector<8x1xf32>
    %c8_i32 = arith.constant 8 : i32
    %12 = arith.muli %arg0, %c8_i32 : i32
    %13 = tpu.iota {dimensions = array<i32: 0>} : vector<8x1xi32>
    %14 = vector.broadcast %12 : i32 to vector<8x1xi32>
    %15 = arith.addi %14, %13 : vector<8x1xi32>
    %c8_i32_6 = arith.constant 8 : i32
    %16 = vector.broadcast %c8_i32_6 : i32 to vector<8x1xi32>
    %17 = arith.cmpi slt, %15, %16 : vector<8x1xi32>
    %cst_7 = arith.constant 0.000000e+00 : f32
    %18 = vector.broadcast %cst_7 : f32 to vector<8x1xf32>
    %19 = arith.select %17, %5, %18 : vector<8x1xi1>, vector<8x1xf32>
    %cst_8 = arith.constant 0.000000e+00 : f32
    %20 = vector.broadcast %cst_8 : f32 to vector<8x1xf32>
    %21 = arith.select %17, %11, %20 : vector<8x1xi1>, vector<8x1xf32>
    %22 = arith.mulf %21, %19 : vector<8x1xf32>
    %cst_9 = arith.constant 9.99999996E-13 : f32
    %cst_10 = arith.constant 9.99999995E+11 : f32
    %23 = vector.broadcast %cst_9 : f32 to vector<8x1xf32>
    %24 = arith.maximumf %23, %22 : vector<8x1xf32>
    %25 = vector.broadcast %cst_10 : f32 to vector<8x1xf32>
    %26 = arith.minimumf %25, %24 : vector<8x1xf32>
    %cst_11 = arith.constant 0.000000e+00 : f32
    %27 = vector.broadcast %cst_11 : f32 to vector<8x1xf32>
    %28 = arith.select %17, %26, %27 : vector<8x1xi1>, vector<8x1xf32>
    %cst_12 = arith.constant 1.000000e+00 : f32
    %29 = vector.broadcast %cst_12 : f32 to vector<8x1xf32>
    %30 = arith.subf %29, %19 : vector<8x1xf32>
    %31 = arith.mulf %21, %30 : vector<8x1xf32>
    %cst_13 = arith.constant 9.99999996E-13 : f32
    %cst_14 = arith.constant 9.99999995E+11 : f32
    %32 = vector.broadcast %cst_13 : f32 to vector<8x1xf32>
    %33 = arith.maximumf %32, %31 : vector<8x1xf32>
    %34 = vector.broadcast %cst_14 : f32 to vector<8x1xf32>
    %35 = arith.minimumf %34, %33 : vector<8x1xf32>
    %cst_15 = arith.constant 0.000000e+00 : f32
    %36 = vector.broadcast %cst_15 : f32 to vector<8x1xf32>
    %37 = arith.select %17, %35, %36 : vector<8x1xi1>, vector<8x1xf32>
    %c0_16 = arith.constant 0 : index
    %c0_17 = arith.constant 0 : index
    %38 = vector.load %arg5[%c0_16, %c0_17] : memref<1x1xf32, #tpu.memory_space<vmem>>, vector<1x1xf32>
    %39 = vector.shape_cast %19 : vector<8x1xf32> to vector<1x8x1xf32>
    %cst_18 = arith.constant dense<0.000000e+00> : vector<1xf32>
    %40 = vector.multi_reduction <add>, %39, %cst_18 [1, 2] : vector<1x8x1xf32> to vector<1xf32>
    %41 = vector.shape_cast %40 : vector<1xf32> to vector<1x1x1xf32>
    %42 = vector.extract %41[0, 0, 0] : f32 from vector<1x1x1xf32>
    %43 = vector.broadcast %42 : f32 to vector<1x1xf32>
    %44 = arith.addf %38, %43 : vector<1x1xf32>
    %c0_19 = arith.constant 0 : index
    %c0_20 = arith.constant 0 : index
    %45 = vector.load %arg5[%c0_19, %c0_20] : memref<1x1xf32, #tpu.memory_space<vmem>>, vector<1x1xf32>
    tpu.vector_store %arg5[%c0_19, %c0_20], %44 {strides = array<i32>} : memref<1x1xf32, #tpu.memory_space<vmem>>, vector<1x1xf32>,
    %c0_21 = arith.constant 0 : index
    %c0_22 = arith.constant 0 : index
    %46 = vector.load %arg6[%c0_21, %c0_22] : memref<1x1xf32, #tpu.memory_space<vmem>>, vector<1x1xf32>
    %47 = vector.shape_cast %28 : vector<8x1xf32> to vector<1x8x1xf32>
    %cst_23 = arith.constant dense<0.000000e+00> : vector<1xf32>
    %48 = vector.multi_reduction <add>, %47, %cst_23 [1, 2] : vector<1x8x1xf32> to vector<1xf32>
    %49 = vector.shape_cast %48 : vector<1xf32> to vector<1x1x1xf32>
    %50 = vector.extract %49[0, 0, 0] : f32 from vector<1x1x1xf32>
    %51 = vector.broadcast %50 : f32 to vector<1x1xf32>
    %52 = arith.addf %46, %51 : vector<1x1xf32>
    %c0_24 = arith.constant 0 : index
    %c0_25 = arith.constant 0 : index
    %53 = vector.load %arg6[%c0_24, %c0_25] : memref<1x1xf32, #tpu.memory_space<vmem>>, vector<1x1xf32>
    tpu.vector_store %arg6[%c0_24, %c0_25], %52 {strides = array<i32>} : memref<1x1xf32, #tpu.memory_space<vmem>>, vector<1x1xf32>,
    %c0_26 = arith.constant 0 : index
    %c0_27 = arith.constant 0 : index
    %54 = vector.load %arg7[%c0_26, %c0_27] : memref<1x1xf32, #tpu.memory_space<vmem>>, vector<1x1xf32>
    %55 = vector.shape_cast %37 : vector<8x1xf32> to vector<1x8x1xf32>
    %cst_28 = arith.constant dense<0.000000e+00> : vector<1xf32>
    %56 = vector.multi_reduction <add>, %55, %cst_28 [1, 2] : vector<1x8x1xf32> to vector<1xf32>
    %57 = vector.shape_cast %56 : vector<1xf32> to vector<1x1x1xf32>
    %58 = vector.extract %57[0, 0, 0] : f32 from vector<1x1x1xf32>
    %59 = vector.broadcast %58 : f32 to vector<1x1xf32>
    %60 = arith.addf %54, %59 : vector<1x1xf32>
    %c0_29 = arith.constant 0 : index
    %c0_30 = arith.constant 0 : index
    %61 = vector.load %arg7[%c0_29, %c0_30] : memref<1x1xf32, #tpu.memory_space<vmem>>, vector<1x1xf32>
    tpu.vector_store %arg7[%c0_29, %c0_30], %60 {strides = array<i32>} : memref<1x1xf32, #tpu.memory_space<vmem>>, vector<1x1xf32>,
    %c0_i32_31 = arith.constant 0 : i32
    %62 = arith.cmpi eq, %arg0, %c0_i32_31 : i32
    %63 = arith.extui %62 : i1 to i32
    %c0_i32_32 = arith.constant 0 : i32
    %64 = arith.cmpi ne, %63, %c0_i32_32 : i32
    scf.if %64 {
      %c0_33 = arith.constant 0 : index
      %c0_34 = arith.constant 0 : index
      %65 = vector.load %arg5[%c0_33, %c0_34] : memref<1x1xf32, #tpu.memory_space<vmem>>, vector<1x1xf32>
      %c0_35 = arith.constant 0 : index
      %c0_36 = arith.constant 0 : index
      %66 = vector.load %arg6[%c0_35, %c0_36] : memref<1x1xf32, #tpu.memory_space<vmem>>, vector<1x1xf32>
      %c0_37 = arith.constant 0 : index
      %c0_38 = arith.constant 0 : index
      %67 = vector.load %arg7[%c0_37, %c0_38] : memref<1x1xf32, #tpu.memory_space<vmem>>, vector<1x1xf32>
      %cst_39 = arith.constant 0.000000e+00 : f32
      %68 = vector.broadcast %cst_39 : f32 to vector<1x1xf32>
      %69 = arith.cmpf one, %65, %68 : vector<1x1xf32>
      %cst_40 = arith.constant 1.000000e+00 : f32
      %70 = vector.broadcast %cst_40 : f32 to vector<1x1xf32>
      %71 = arith.maximumf %65, %70 : vector<1x1xf32>
      %72 = arith.divf %66, %71 : vector<1x1xf32>
      %73 = arith.select %69, %72, %66 : vector<1x1xi1>, vector<1x1xf32>
      %cst_41 = arith.constant 8.000000e+00 : f32
      %74 = vector.broadcast %cst_41 : f32 to vector<1x1xf32>
      %75 = arith.cmpf one, %65, %74 : vector<1x1xf32>
      %cst_42 = arith.constant 8.000000e+00 : f32
      %76 = vector.broadcast %cst_42 : f32 to vector<1x1xf32>
      %77 = arith.subf %76, %65 : vector<1x1xf32>
      %cst_43 = arith.constant 1.000000e+00 : f32
      %78 = vector.broadcast %cst_43 : f32 to vector<1x1xf32>
      %79 = arith.maximumf %77, %78 : vector<1x1xf32>
      %80 = arith.divf %67, %79 : vector<1x1xf32>
      %81 = arith.select %75, %80, %67 : vector<1x1xi1>, vector<1x1xf32>
      %82 = arith.subf %81, %73 : vector<1x1xf32>
      %cst_44 = arith.constant 4.800000e+00 : f32
      %83 = vector.broadcast %cst_44 : f32 to vector<1x1xf32>
      %84 = arith.addf %82, %83 : vector<1x1xf32>
      %cst_45 = arith.constant 0.000000e+00 : f32
      %85 = vector.broadcast %cst_45 : f32 to vector<1x1xf32>
      %86 = arith.maximumf %84, %85 : vector<1x1xf32>
      %87 = arith.addf %81, %86 : vector<1x1xf32>
      %c0_46 = arith.constant 0 : index
      %c0_47 = arith.constant 0 : index
      %88 = vector.load %arg4[%c0_46, %c0_47] : memref<1x1xf32, #tpu.memory_space<vmem>>, vector<1x1xf32>
      tpu.vector_store %arg4[%c0_46, %c0_47], %87 {strides = array<i32>} : memref<1x1xf32, #tpu.memory_space<vmem>>, vector<1x1xf32>,
    } else {
    }
    return
  }
  func.func @transform_0(%arg0: i32) -> (i32, i32) {
    %c0_i32 = arith.constant 0 : i32
    %c0_i32_0 = arith.constant 0 : i32
    return %arg0, %c0_i32 : i32, i32
  }
  func.func @transform_1(%arg0: i32) -> (i32, i32) {
    %c0_i32 = arith.constant 0 : i32
    %c0_i32_0 = arith.constant 0 : i32
    %c0_i32_1 = arith.constant 0 : i32
    return %c0_i32, %c0_i32_0 : i32, i32
  }
  func.func @transform_2(%arg0: i32) -> (i32, i32) {
    %c0_i32 = arith.constant 0 : i32
    %c0_i32_0 = arith.constant 0 : i32
    return %arg0, %c0_i32 : i32, i32
  }
  func.func @transform_3(%arg0: i32) -> (i32, i32) {
    %c0_i32 = arith.constant 0 : i32
    %c0_i32_0 = arith.constant 0 : i32
    %c0_i32_1 = arith.constant 0 : i32
    return %c0_i32, %c0_i32_0 : i32, i32
  }
}

</mosaic_0001>

<llo_original>
// kernel: tpu_custom_call.1
$region0: #{tpu_custom_call.1}
  #allocation0 [shape = 'u32[]', space=smem, size = 0x4, offset = 0x4, fixed_abs, tag = 'smem constant byte address 0x4 - core index']
  #allocation1 [shape = 'u32[72,128]{1,0:T(1,128)}', space=vmem, size = 0x9000, scoped, tag = 'internal scratch']
  #allocation2 [shape = 'f32[1,1]{1,0:T(1,128)}', space=vmem, size = 0x200, scoped, tag = 'scratch operand']
  #allocation3 [shape = 'f32[1,1]{1,0:T(1,128)}', space=vmem, size = 0x200, scoped, tag = 'scratch operand']
  #allocation4 [shape = 'f32[1,1]{1,0:T(1,128)}', space=vmem, size = 0x200, scoped, tag = 'scratch operand']
  %s0 = inlined_call_operand.hbm [shape: f32[8,256], index: 0, kind: input, shape index: {}]
  %s1 = inlined_call_operand.vmem [shape: f32[1,256], index: 1, kind: input, shape index: {}]
  %s2 = inlined_call_operand.vmem [shape: f32[8,1], index: 2, kind: input, shape index: {}]
  %s3 = inlined_call_operand.hbm [shape: f32[1,1], index: 3, kind: output, shape index: {}]
  %s4 = sld [smem:[#allocation0]]
  $region34: #{tpu_custom_call.1} parent=0
    _
  %s6 = ssub.s32 1, %s4
  %s7 = scalar_select 0, %s6, %s4
  $region1: #{tpu_custom_call.1} parent=0
    #allocation5 [shape = 'u8[8192]{0}', space=vmem, size = 0x2000, scoped, tag = 'input window, operand 0, single buffered']
    #allocation6 [shape = 's32[1]{0}', space=sflag, size = 0x4, scoped, tag = 'scoped memory for tpu_custom_call.1']
    #allocation7 [shape = 's32[1]{0}', space=sflag, size = 0x4, scoped, tag = 'scoped memory for tpu_custom_call.1']
    #allocation8 [shape = 'u8[512]{0}', space=vmem, size = 0x400, scoped, tag = 'output window, operand 0, single buffered']
    %8 = vsyncpa [#allocation6], 0
    %9 = vsyncpa [#allocation7], 0
    // Predicated region
    $region2: #{tpu_custom_call.1} parent=1 // pred_check
      _
    $region3: #{tpu_custom_call.1} parent=1 // pred_check_branch
      %11 = sbr.rel (0) target = $region5
    $region4: #{tpu_custom_call.1} parent=1 // pred_region
      %13 = vsyncadd [#allocation6], 0
      %s15 = sshll.u32 %s0, 4
      %s16 = int_to_ptr.hbm [resolvable:$true] %s15
      %s17 = sshll.u32 [#allocation5], 4
      %s18 = int_to_ptr.vmem [resolvable:$true] %s17
      %20 = dma.hbm_to_vmem [thread:$0]  %s16, 256, %s18, [#allocation6]
    $region5: #{tpu_custom_call.1} parent=1 // pred_fallthru
      _
    // Predicated region
    $region6: #{tpu_custom_call.1} parent=1 // pred_check
      _
    $region7: #{tpu_custom_call.1} parent=1 // pred_check_branch
      %22 = sbr.rel (0) target = $region9
    $region8: #{tpu_custom_call.1} parent=1 // pred_region
      _
    $region9: #{tpu_custom_call.1} parent=1 // pred_fallthru
      _
    // Predicated region
    $region10: #{tpu_custom_call.1} parent=1 // pred_check
      _
    $region11: #{tpu_custom_call.1} parent=1 // pred_check_branch
      %24 = sbr.rel (0) target = $region13
    $region12: #{tpu_custom_call.1} parent=1 // pred_region
      _
    $region13: #{tpu_custom_call.1} parent=1 // pred_fallthru
      _
    // Predicated region
    $region14: #{tpu_custom_call.1} parent=1 // pred_check
      _
    $region15: #{tpu_custom_call.1} parent=1 // pred_check_branch
      %26 = sbr.rel (0) target = $region17
    $region16: #{tpu_custom_call.1} parent=1 // pred_region
      %28 = dma.done [#allocation6], 256
    $region17: #{tpu_custom_call.1} parent=1 // pred_fallthru
      _
    %p29 = scmp.eq.s32.totalorder 0, 0
    // Predicated region
    $region18: #{tpu_custom_call.1} parent=1 // pred_check
      %p30 = pneg %p29
    $region19: #{tpu_custom_call.1} parent=1 // pred_check_branch
      %32 = sbr.rel (%p30) target = $region21
    $region20: #{tpu_custom_call.1} parent=1 // pred_region
      %vm33 = vcmask 0
      %34 = vst.msk [vmem:[#allocation2] sm:$0x1] %vm33, 0.0
      %35 = vst.msk [vmem:[#allocation3] sm:$0x1] %vm33, 0.0
      %36 = vst.msk [vmem:[#allocation4] sm:$0x1] %vm33, 0.0
    $region21: #{tpu_custom_call.1} parent=1 // pred_fallthru
      _
    %v37 = vld [vmem:[#allocation5] sm:$0xff]
    %v38 = vld [vmem:[#allocation5 + $0x8] sm:$0xff]
    %v39 = vld [vmem:[%s1] sm:$0x3]
    %v40 = vld [vmem:[%s2] sm:$0xff]
    %v42 = vperm.slane %v39, 0
    %v43 = vperm.slane %v39, 1
    %v46 = vsub.f32 %v37, %v42
    %v47 = vsub.f32 %v38, %v43
    %v48 = vmul.f32 %v46, %v46
    %v49 = vmul.f32 %v47, %v47
    %v50 = vadd.f32 %v48, %v49
    %51 = vadd.xlane.f32.xlu0 %v50
    %v52 = vpop.xlane.xlu0 %51
    %v53 = vrsqrt.pop %v52
    %v54 = vmul.f32 %v53, %v52
    %v55 = vmul.f32 %v54, %v53
    %v56 = vmul.f32 0.5, %v55
    %v57 = vsub.f32 1.5, %v56
    %v58 = vmul.f32 %v53, %v57
    %v59 = vmul.f32 %v52, %v58
    %vm60 = vcmp.eq.f32.partialorder %v52, inf
    %v61 = vsel %vm60, %v52, %v59
    %vm62 = vcmp.eq.f32.partialorder %v52, 0.0
    %v63 = vand.u32 %v52, 2147483648
    %v64 = vsel %vm62, %v63, %v61
    %s65 = smul.u32 0, 8
    %v66 = vlaneseq
    %v67 = vshrl.u32 %v66, 7
    %v68 = vstv %s65
    %v69 = vadd.s32 %v68, %v67
    %vm70 = vcmp.lt.s32.totalorder %v69, 8
    %v71 = vsel %vm70, %v40, 0.0
    %v72 = vsel %vm70, %v64, 0.0
    %v73 = vmul.f32 %v72, %v71
    %v74 = vmax.f32 %v73, 1e-12
    %v75 = vmin.f32 %v74, 1e+12
    %v76 = vsel %vm70, %v75, 0.0
    %v77 = vsub.f32 1.0, %v71
    %v78 = vmul.f32 %v72, %v77
    %v79 = vmax.f32 %v78, 1e-12
    %v80 = vmin.f32 %v79, 1e+12
    %v81 = vsel %vm70, %v80, 0.0
    %v82 = vld [vmem:[#allocation2] sm:$0x1]
    %vm83 = vcmask 7168
    %v84 = vsel %vm83, %v71, 0.0
    %85 = vadd.xlane.f32.xlu0 %v84
    %v86 = vpop.xlane.xlu0 %85
    %v87 = vrot.slane %v86, 4
    %v88 = vadd.f32 %v86, %v87
    %v89 = vrot.slane %v88, 2
    %v90 = vadd.f32 %v88, %v89
    %v91 = vrot.slane %v90, 1
    %v92 = vadd.f32 %v90, %v91
    %s93 = vtos %v92
    %v94 = vstv %s93
    %v95 = vadd.f32 %v82, %v94
    %vm96 = vcmask 0
    %97 = vst.msk [vmem:[#allocation2] sm:$0x1] %vm96, %v95
    %v98 = vld [vmem:[#allocation3] sm:$0x1]
    %v99 = vsel %vm83, %v76, 0.0
    %100 = vadd.xlane.f32.xlu0 %v99
    %v101 = vpop.xlane.xlu0 %100
    %v102 = vrot.slane %v101, 4
    %v103 = vadd.f32 %v101, %v102
    %v104 = vrot.slane %v103, 2
    %v105 = vadd.f32 %v103, %v104
    %v106 = vrot.slane %v105, 1
    %v107 = vadd.f32 %v105, %v106
    %s108 = vtos %v107
    %v109 = vstv %s108
    %v110 = vadd.f32 %v98, %v109
    %111 = vst.msk [vmem:[#allocation3] sm:$0x1] %vm96, %v110
    %v112 = vld [vmem:[#allocation4] sm:$0x1]
    %v113 = vsel %vm83, %v81, 0.0
    %114 = vadd.xlane.f32.xlu0 %v113
    %v115 = vpop.xlane.xlu0 %114
    %v116 = vrot.slane %v115, 4
    %v117 = vadd.f32 %v115, %v116
    %v118 = vrot.slane %v117, 2
    %v119 = vadd.f32 %v117, %v118
    %v120 = vrot.slane %v119, 1
    %v121 = vadd.f32 %v119, %v120
    %s122 = vtos %v121
    %v123 = vstv %s122
    %v124 = vadd.f32 %v112, %v123
    %125 = vst.msk [vmem:[#allocation4] sm:$0x1] %vm96, %v124
    // Predicated region
    $region22: #{tpu_custom_call.1} parent=1 // pred_check
      %p126 = pneg %p29
    $region23: #{tpu_custom_call.1} parent=1 // pred_check_branch
      %128 = sbr.rel (%p126) target = $region25
    $region24: #{tpu_custom_call.1} parent=1 // pred_region
      %v129 = vld [vmem:[#allocation2] sm:$0x1]
      %v130 = vld [vmem:[#allocation3] sm:$0x1]
      %v131 = vld [vmem:[#allocation4] sm:$0x1]
      %vm132 = vcmp.ne.f32.partialorder %v129, 0.0
      %v133 = vmax.f32 %v129, 1.0
      %v134 = vrcp.pop %v133
      %v135 = vmul.f32 %v133, %v134
      %v136 = vsub.f32 1.0, %v135
      %v137 = vmul.f32 %v134, %v136
      %v138 = vadd.f32 %v134, %v137
      %vm139 = vweird.f32 %v133
      %vm140 = vweird.f32 %v134
      %vm141 = vmor %vm139, %vm140
      %v142 = vsel %vm141, %v134, %v138
      %v143 = vand.u32 2147483647, %v133
      %vm144 = vcmp.eq.f32.partialorder %v143, 8.507059e+37
      %v145 = vand.u32 %v133, 2147483648
      %v146 = vor.u32 1.1754944e-38, %v145
      %v147 = vsel %vm144, %v146, %v142
      %v148 = vmul.f32 %v130, %v147
      %v149 = vsel %vm132, %v148, %v130
      %vm150 = vcmp.ne.f32.partialorder %v129, 8.0
      %v151 = vsub.f32 8.0, %v129
      %v152 = vmax.f32 %v151, 1.0
      %v153 = vrcp.pop %v152
      %v154 = vmul.f32 %v152, %v153
      %v155 = vsub.f32 1.0, %v154
      %v156 = vmul.f32 %v153, %v155
      %v157 = vadd.f32 %v153, %v156
      %vm158 = vweird.f32 %v152
      %vm159 = vweird.f32 %v153
      %vm160 = vmor %vm158, %vm159
      %v161 = vsel %vm160, %v153, %v157
      %v162 = vand.u32 2147483647, %v152
      %vm163 = vcmp.eq.f32.partialorder %v162, 8.507059e+37
      %v164 = vand.u32 %v152, 2147483648
      %v165 = vor.u32 1.1754944e-38, %v164
      %v166 = vsel %vm163, %v165, %v161
      %v167 = vmul.f32 %v131, %v166
      %v168 = vsel %vm150, %v167, %v131
      %v169 = vsub.f32 %v168, %v149
      %v170 = vadd.f32 %v169, 4.8
      %v171 = vmax.f32 %v170, 0.0
      %v172 = vadd.f32 %v168, %v171
      %173 = vst.msk [vmem:[#allocation8] sm:$0x1] %vm96, %v172
    $region25: #{tpu_custom_call.1} parent=1 // pred_fallthru
      _
    // Predicated region
    $region26: #{tpu_custom_call.1} parent=1 // pred_check
      _
    $region27: #{tpu_custom_call.1} parent=1 // pred_check_branch
      %175 = sbr.rel (0) target = $region29
    $region28: #{tpu_custom_call.1} parent=1 // pred_region
      %177 = vsyncadd [#allocation7], 0
      %s179 = sshll.u32 [#allocation8], 4
      %s180 = int_to_ptr.vmem [resolvable:$true] %s179
      %s181 = sshll.u32 %s3, 4
      %s182 = int_to_ptr.hbm [resolvable:$true] %s181
      %184 = dma.vmem_to_hbm [thread:$0]  %s180, 16, %s182, [#allocation7]
    $region29: #{tpu_custom_call.1} parent=1 // pred_fallthru
      _
    // Predicated region
    $region30: #{tpu_custom_call.1} parent=1 // pred_check
      _
    $region31: #{tpu_custom_call.1} parent=1 // pred_check_branch
      %186 = sbr.rel (0) target = $region33
    $region32: #{tpu_custom_call.1} parent=1 // pred_region
      %188 = dma.done [#allocation7], 16
    $region33: #{tpu_custom_call.1} parent=1 // pred_fallthru
      _
    %189 = vsyncpa [#allocation6], 1
    %190 = vsyncpa [#allocation7], 1

</llo_original>
